<compile_context>
chip_gen: v7x
topology: tpu7x:2x2x1
jax: 0.10.0
libtpu: 0.0.40
codegen_flags: <defaults>
</compile_context>

<pallas_src>
import functools

import jax
import jax.numpy as jnp
from jax.experimental import pallas as pl
from jax.experimental.pallas import tpu as pltpu


def pip_kernel(x_ref, qw_ref, bs_ref, w1t_ref, out_ref, *,
               attritube_num, conv_num, approx_recip):
    # x_ref:   (Bt, c, r)    native NCHW with spatial flattened (r = w*h)
    # qw_ref:  (L+K, c)      fused [query ; convS weight]
    # bs_ref:  (K, 1)        convS bias
    # w1t_ref: (K, L, L)     conv_layer weight, per-branch-transposed
    # out_ref: (Bt, L)
    L = attritube_num
    K = conv_num
    x = x_ref[...]                                               # (Bt, c, r)
    bt, _, r = x.shape

    # One fused MXU pass per tile: [query ; ws] against every (c, r) slab.
    qw = jnp.broadcast_to(qw_ref[...], (bt,) + qw_ref.shape)     # (Bt, L+K, c)
    s_all = jnp.einsum('bkc,bcr->bkr', qw, x,
                       preferred_element_type=jnp.float32)       # (Bt, L+K, r)

    s3 = s_all[:, :L, :]                                         # (Bt, L, r)
    sig = jax.nn.sigmoid(s_all[:, L:, :] + bs_ref[...])          # (Bt, K, r)

    # K gated branches + 1 plain branch (gate == 1) share ONE reduction tree.
    gates = jnp.concatenate(
        [sig, jnp.ones((bt, 1, r), jnp.float32)], axis=1)        # (Bt, K+1, r)
    s_stack = s3[:, None, :, :] * gates[:, :, None, :]           # (Bt, K+1, L, r)

    # max over r of softmax over r == 1 / sum(exp(s - max(s)))   (lane reduce)
    m = jnp.max(s_stack, axis=-1, keepdims=True)                 # (Bt, K+1, L, 1)
    denom = jnp.sum(jnp.exp(s_stack - m), axis=-1)               # (Bt, K+1, L)
    if approx_recip:
        peaks = pl.reciprocal(denom, approx=True)
    else:
        peaks = 1.0 / denom                                      # exact (tolerance)

    attr_x = peaks[:, K, :]                                      # (Bt, L) plain branch

    # Conv1d(kernel=1, bias=False): K tiny per-branch matmuls (K static & small),
    # avoiding an in-kernel (Bt, K, L) -> (Bt, K*L) lane re-merge.
    mixed = jnp.zeros((bt, L), jnp.float32)
    for k in range(K):
        mixed = mixed + jnp.dot(peaks[:, k, :], w1t_ref[k],
                                preferred_element_type=jnp.float32)

    out_ref[...] = (0.7 * attr_x + 0.3 * mixed).astype(out_ref.dtype)


def _vmem_capacity_bytes():
    try:
        return int(pltpu.get_tpu_info().vmem_capacity_bytes)
    except Exception:
        return 64 * 1024 * 1024   # conservative default (v7x per-core VMEM)


def _choose_bt(n, c, r, L, K, itemsize, budget_bytes):
    """Largest aligned batch tile whose double-buffered I/O tiles plus in-kernel
    f32 intermediates fit the VMEM budget.  Alignment: bt == n or bt % 8 == 0,
    so the (bt, L) output block avoids masked sub-8 sublane stores."""
    per_bt = (
        2 * c * r * itemsize              # double-buffered x tile
        + 2 * L * 4                       # double-buffered out tile
        + ((L + K) * c * itemsize         # broadcast qw copy
           + (L + K) * r * 4              # s_all
           + (K + 1) * r * 4              # gates
           + 2 * (K + 1) * L * r * 4      # s_stack + exp temporary
           + (K + 1) * L * 4))            # peaks
    fixed = 2 * ((L + K) * c * itemsize + K * 4 + K * L * L * 4) + (2 << 20)
    max_bt = max(1, max(budget_bytes - fixed, per_bt) // per_bt)

    cands = [b for b in range(1, n + 1)
             if n % b == 0 and (b == n or b % 8 == 0)]
    fitting = [b for b in cands if b <= max_bt] or [min(cands)]
    best = max(fitting)
    # Keep >= 2 grid steps (v7x has 2 TensorCores) as long as tiles stay big
    # enough to amortize the ~0.35 us per-step pipeline overhead.
    if n // best < 2:
        multi = [b for b in fitting if n // b >= 2 and b * r >= 512]
        if multi:
            best = max(multi)
    return best


def pip_forward(x, query, ws, bs, w1, *, bt=None, mxu_dtype=jnp.float32,
                approx_recip=False):
    """x: (n, c, w, h) NCHW. query: (L, c). ws/bs: convS (K, c)/(K,).
    w1: conv_layer weight (L, K*L). Returns (n, L) float32."""
    n, c, w, h = x.shape
    L = query.shape[0]
    K = ws.shape[0]
    r = w * h

    # Native layout: only collapse (w, h) -> r (free); no HBM transpose pass.
    x3 = x.reshape(n, c, r).astype(mxu_dtype)
    qw = jnp.concatenate([query, ws], axis=0).astype(mxu_dtype)   # (L+K, c)
    bs_col = bs.reshape(K, 1).astype(jnp.float32)
    # w1[l, k*L + j] -> w1t_kll[k, j, l]   (per-branch transposed blocks)
    w1t_kll = w1.reshape(L, K, L).transpose(1, 2, 0).astype(jnp.float32)  # (K, L, L)

    capacity = _vmem_capacity_bytes()
    vmem_limit = int(capacity * 0.75)
    itemsize = jnp.dtype(mxu_dtype).itemsize
    if bt is None:
        bt = _choose_bt(n, c, r, L, K, itemsize, int(vmem_limit * 0.6))
    assert n % bt == 0, "batch tile must divide n"
    grid = (n // bt,)

    kernel = functools.partial(pip_kernel, attritube_num=L, conv_num=K,
                               approx_recip=approx_recip)

    cost = pl.CostEstimate(
        flops=(2 * n * (L + K) * c * r          # fused logits matmul
               + 2 * n * K * L * L              # conv_layer mix
               + 4 * n * (K + 1) * L * r),      # gated softmax elementwise
        transcendentals=n * (K + 1) * L * r + n * K * r,
        bytes_accessed=(x3.size * itemsize + n * L * 4
                        + qw.size * itemsize + bs_col.size * 4
                        + w1t_kll.size * 4),
    )

    out = pl.pallas_call(
        kernel,
        out_shape=jax.ShapeDtypeStruct((n, L), jnp.float32),
        grid_spec=pltpu.PrefetchScalarGridSpec(
            num_scalar_prefetch=0,
            grid=grid,
            in_specs=[
                pl.BlockSpec((bt, c, r), lambda b: (b, 0, 0)),
                pl.BlockSpec((L + K, c), lambda b: (0, 0)),
                pl.BlockSpec((K, 1), lambda b: (0, 0)),
                pl.BlockSpec((K, L, L), lambda b: (0, 0, 0)),
            ],
            out_specs=pl.BlockSpec((bt, L), lambda b: (b, 0)),
        ),
        compiler_params=pltpu.CompilerParams(
            dimension_semantics=("parallel",),
            vmem_limit_bytes=vmem_limit,
        ),
        cost_estimate=cost,
    )(x3, qw, bs_col, w1t_kll)
    return out


def pip_reference(x, query, ws, bs, w1):
    """Pure-JAX reference matching the PyTorch forward."""
    n, c, w, h = x.shape
    K = ws.shape[0]
    r = w * h
    xf = x.reshape(n, c, r)
    weight = jax.nn.sigmoid(
        jnp.einsum('kc,ncr->nkr', ws, xf) + bs.reshape(1, K, 1)
    )
    attrs = []
    for i in range(K):
        xw = xf * weight[:, i:i + 1, :]
        s = jnp.einsum('lv,nvr->nlr', query, xw)
        p = jax.nn.softmax(s, axis=-1)
        attrs.append(jnp.max(p, axis=-1))
    concat = jnp.concatenate(attrs, axis=1)            # (n, K*L)
    mixed = concat @ w1.T                              # (n, L)
    s = jnp.einsum('lv,nvr->nlr', query, xf)
    p = jax.nn.softmax(s, axis=-1)
    attr_x = jnp.max(p, axis=-1)                       # (n, L)
    return 0.7 * attr_x + 0.3 * mixed


if __name__ == "__main__":
    # Module config (small, consistent with the forward signature)
    in_channels = 16       # c
    conv_num = 2           # K
    attritube_num = 8      # L
    n, c, w, h = 2, in_channels, 8, 8

    key = jax.random.PRNGKey(0)
    k_x, k_q, k_ws, k_bs, k_w1 = jax.random.split(key, 5)

    x = jax.random.normal(k_x, (n, c, w, h), dtype=jnp.float32)
    query = jax.random.normal(k_q, (attritube_num, c), dtype=jnp.float32)
    # convS: Conv2d(c, K, 1) -> (K, c) weight + (K,) bias
    ws = jax.random.normal(k_ws, (conv_num, c), dtype=jnp.float32) * 0.1
    bs = jax.random.normal(k_bs, (conv_num,), dtype=jnp.float32) * 0.1
    # conv_layer: Conv1d(K*L, L, 1, bias=False) -> (L, K*L)
    w1 = jax.random.normal(
        k_w1, (attritube_num, conv_num * attritube_num), dtype=jnp.float32
    ) * 0.1

    ref = pip_reference(x, query, ws, bs, w1)

    # f32 MXU-input path (exact reciprocal): tight tolerance.
    out = jax.block_until_ready(pip_forward(x, query, ws, bs, w1))
    assert out.shape == (n, attritube_num)
    assert jnp.allclose(out, ref, atol=1e-5, rtol=1e-5), (
        "f32 mismatch vs reference: max abs diff = "
        f"{jnp.max(jnp.abs(out - ref))}"
    )

    # bf16 MXU-input path (halves HBM traffic of x); softmax math stays f32.
    out_bf16 = jax.block_until_ready(
        pip_forward(x, query, ws, bs, w1,
                    mxu_dtype=jnp.bfloat16, approx_recip=True))
    assert jnp.allclose(out_bf16, ref, atol=1e-1, rtol=1e-1), (
        "bf16 mismatch vs reference: max abs diff = "
        f"{jnp.max(jnp.abs(out_bf16 - ref))}"
    )

    print("KERNEL_OK")
</pallas_src>

<mosaic_0001>
module attributes {stable_mosaic.version = 11 : i64} {
  func.func @pip_kernel(%arg0: i32, %arg1: memref<2x16x64xf32, #tpu.memory_space<vmem>>, %arg2: memref<10x16xf32, #tpu.memory_space<vmem>>, %arg3: memref<2x1xf32, #tpu.memory_space<vmem>>, %arg4: memref<2x8x8xf32, #tpu.memory_space<vmem>>, %arg5: memref<2x8xf32, #tpu.memory_space<vmem>>) attributes {dimension_semantics = [#tpu.dimension_semantics<parallel>], iteration_bounds = array<i64: 1>, scalar_prefetch = 0 : i64, scratch_operands = 0 : i64, tpu.core_type = #tpu.core_type<tc>, window_params = [{transform_indices = @transform_0, window_bounds = array<i64: 2, 16, 64>}, {pipeline_mode = #tpu.pipeline_mode<synchronous>, transform_indices = @transform_1, window_bounds = array<i64: 10, 16>}, {pipeline_mode = #tpu.pipeline_mode<synchronous>, transform_indices = @transform_2, window_bounds = array<i64: 2, 1>}, {pipeline_mode = #tpu.pipeline_mode<synchronous>, transform_indices = @transform_3, window_bounds = array<i64: 2, 8, 8>}, {transform_indices = @transform_4, window_bounds = array<i64: 2, 8>}]} {
    %c0 = arith.constant 0 : index
    %c0_0 = arith.constant 0 : index
    %c0_1 = arith.constant 0 : index
    %0 = vector.load %arg1[%c0, %c0_0, %c0_1] : memref<2x16x64xf32, #tpu.memory_space<vmem>>, vector<2x16x64xf32>
    %c0_2 = arith.constant 0 : index
    %c0_3 = arith.constant 0 : index
    %1 = vector.load %arg2[%c0_2, %c0_3] : memref<10x16xf32, #tpu.memory_space<vmem>>, vector<10x16xf32>
    %2 = vector.shape_cast %1 : vector<10x16xf32> to vector<1x10x16xf32>
    %3 = vector.broadcast %2 : vector<1x10x16xf32> to vector<2x10x16xf32>
    "tpu.trace_start"() <{level = 10 : i32, message = "bkc,bcr->bkr"}> : () -> ()
    %cst = arith.constant dense<0.000000e+00> : vector<2x10x64xf32>
    %4 = tpu.matmul %3, %0, %cst {dimension_numbers = #tpu.dot_dimension_numbers<[2], [1], [1], [2], [0, 0, 0, 1, 1, 2], [0], [0]>} : vector<2x10x16xf32>, vector<2x16x64xf32>, vector<2x10x64xf32> -> vector<2x10x64xf32>
    "tpu.trace_stop"() : () -> ()
    %5 = vector.extract_strided_slice %4 {offsets = [0, 0, 0], sizes = [2, 8, 64], strides = [1, 1, 1]} : vector<2x10x64xf32> to vector<2x8x64xf32>
    %6 = vector.extract_strided_slice %4 {offsets = [0, 8, 0], sizes = [2, 2, 64], strides = [1, 1, 1]} : vector<2x10x64xf32> to vector<2x2x64xf32>
    %c0_4 = arith.constant 0 : index
    %c0_5 = arith.constant 0 : index
    %7 = vector.load %arg3[%c0_4, %c0_5] : memref<2x1xf32, #tpu.memory_space<vmem>>, vector<2x1xf32>
    %8 = vector.shape_cast %7 : vector<2x1xf32> to vector<1x2x1xf32>
    %9 = vector.broadcast %8 : vector<1x2x1xf32> to vector<2x2x64xf32>
    %10 = arith.addf %6, %9 : vector<2x2x64xf32>
    %11 = arith.negf %10 : vector<2x2x64xf32>
    %12 = math.exp %11 : vector<2x2x64xf32>
    %cst_6 = arith.constant 1.000000e+00 : f32
    %13 = vector.broadcast %cst_6 : f32 to vector<2x2x64xf32>
    %14 = arith.addf %13, %12 : vector<2x2x64xf32>
    %15 = arith.divf %13, %14 : vector<2x2x64xf32>
    %cst_7 = arith.constant 1.000000e+00 : f32
    %16 = vector.broadcast %cst_7 : f32 to vector<2x1x64xf32>
    %17 = tpu.concatenate %15, %16 in 1 : vector<2x2x64xf32>, vector<2x1x64xf32> -> vector<2x3x64xf32>
    %18 = vector.shape_cast %5 : vector<2x8x64xf32> to vector<2x1x8x64xf32>
    %19 = vector.shape_cast %17 : vector<2x3x64xf32> to vector<2x3x1x64xf32>
    %20 = vector.broadcast %18 : vector<2x1x8x64xf32> to vector<2x3x8x64xf32>
    %21 = vector.broadcast %19 : vector<2x3x1x64xf32> to vector<2x3x8x64xf32>
    %22 = arith.mulf %20, %21 : vector<2x3x8x64xf32>
    %cst_8 = arith.constant dense<0xFF800000> : vector<2x3x8xf32>
    %23 = vector.multi_reduction <maximumf>, %22, %cst_8 [3] : vector<2x3x8x64xf32> to vector<2x3x8xf32>
    %24 = vector.shape_cast %23 : vector<2x3x8xf32> to vector<2x3x8x1xf32>
    %25 = vector.broadcast %24 : vector<2x3x8x1xf32> to vector<2x3x8x64xf32>
    %26 = arith.subf %22, %25 : vector<2x3x8x64xf32>
    %27 = math.exp %26 : vector<2x3x8x64xf32>
    %cst_9 = arith.constant dense<0.000000e+00> : vector<2x3x8xf32>
    %28 = vector.multi_reduction <add>, %27, %cst_9 [3] : vector<2x3x8x64xf32> to vector<2x3x8xf32>
    %cst_10 = arith.constant 1.000000e+00 : f32
    %29 = vector.broadcast %cst_10 : f32 to vector<2x3x8xf32>
    %30 = arith.divf %29, %28 : vector<2x3x8xf32>
    %31 = vector.extract_strided_slice %30 {offsets = [0, 2, 0], sizes = [2, 1, 8], strides = [1, 1, 1]} : vector<2x3x8xf32> to vector<2x1x8xf32>
    %32 = vector.shape_cast %31 : vector<2x1x8xf32> to vector<2x8xf32>
    %cst_11 = arith.constant 0.000000e+00 : f32
    %33 = vector.broadcast %cst_11 : f32 to vector<2x8xf32>
    %34 = vector.extract_strided_slice %30 {offsets = [0, 0, 0], sizes = [2, 1, 8], strides = [1, 1, 1]} : vector<2x3x8xf32> to vector<2x1x8xf32>
    %35 = vector.shape_cast %34 : vector<2x1x8xf32> to vector<2x8xf32>
    %c0_12 = arith.constant 0 : index
    %c0_13 = arith.constant 0 : index
    %c0_14 = arith.constant 0 : index
    %36 = vector.load %arg4[%c0_12, %c0_13, %c0_14] : memref<2x8x8xf32, #tpu.memory_space<vmem>>, vector<1x8x8xf32>
    %37 = vector.shape_cast %36 : vector<1x8x8xf32> to vector<8x8xf32>
    %cst_15 = arith.constant dense<0.000000e+00> : vector<2x8xf32>
    %38 = tpu.matmul %35, %37, %cst_15 {dimension_numbers = #tpu.dot_dimension_numbers<[1], [0], [0], [1], [0, 0, 1, 1], [], []>} : vector<2x8xf32>, vector<8x8xf32>, vector<2x8xf32> -> vector<2x8xf32>
    %39 = arith.addf %33, %38 : vector<2x8xf32>
    %40 = vector.extract_strided_slice %30 {offsets = [0, 1, 0], sizes = [2, 1, 8], strides = [1, 1, 1]} : vector<2x3x8xf32> to vector<2x1x8xf32>
    %41 = vector.shape_cast %40 : vector<2x1x8xf32> to vector<2x8xf32>
    %c1 = arith.constant 1 : index
    %c0_16 = arith.constant 0 : index
    %c0_17 = arith.constant 0 : index
    %42 = vector.load %arg4[%c1, %c0_16, %c0_17] : memref<2x8x8xf32, #tpu.memory_space<vmem>>, vector<1x8x8xf32>
    %43 = vector.shape_cast %42 : vector<1x8x8xf32> to vector<8x8xf32>
    %cst_18 = arith.constant dense<0.000000e+00> : vector<2x8xf32>
    %44 = tpu.matmul %41, %43, %cst_18 {dimension_numbers = #tpu.dot_dimension_numbers<[1], [0], [0], [1], [0, 0, 1, 1], [], []>} : vector<2x8xf32>, vector<8x8xf32>, vector<2x8xf32> -> vector<2x8xf32>
    %45 = arith.addf %39, %44 : vector<2x8xf32>
    %cst_19 = arith.constant 0.699999988 : f32
    %46 = vector.broadcast %cst_19 : f32 to vector<2x8xf32>
    %47 = arith.mulf %46, %32 : vector<2x8xf32>
    %cst_20 = arith.constant 3.000000e-01 : f32
    %48 = vector.broadcast %cst_20 : f32 to vector<2x8xf32>
    %49 = arith.mulf %48, %45 : vector<2x8xf32>
    %50 = arith.addf %47, %49 : vector<2x8xf32>
    %c0_21 = arith.constant 0 : index
    %c0_22 = arith.constant 0 : index
    %51 = vector.load %arg5[%c0_21, %c0_22] : memref<2x8xf32, #tpu.memory_space<vmem>>, vector<2x8xf32>
    tpu.vector_store %arg5[%c0_21, %c0_22], %50 {strides = array<i32>} : memref<2x8xf32, #tpu.memory_space<vmem>>, vector<2x8xf32>,
    return
  }
  func.func @transform_0(%arg0: i32) -> (i32, i32, i32) {
    %c0_i32 = arith.constant 0 : i32
    %c0_i32_0 = arith.constant 0 : i32
    %c0_i32_1 = arith.constant 0 : i32
    return %arg0, %c0_i32, %c0_i32_0 : i32, i32, i32
  }
  func.func @transform_1(%arg0: i32) -> (i32, i32) {
    %c0_i32 = arith.constant 0 : i32
    %c0_i32_0 = arith.constant 0 : i32
    %c0_i32_1 = arith.constant 0 : i32
    return %c0_i32, %c0_i32_0 : i32, i32
  }
  func.func @transform_2(%arg0: i32) -> (i32, i32) {
    %c0_i32 = arith.constant 0 : i32
    %c0_i32_0 = arith.constant 0 : i32
    %c0_i32_1 = arith.constant 0 : i32
    return %c0_i32, %c0_i32_0 : i32, i32
  }
  func.func @transform_3(%arg0: i32) -> (i32, i32, i32) {
    %c0_i32 = arith.constant 0 : i32
    %c0_i32_0 = arith.constant 0 : i32
    %c0_i32_1 = arith.constant 0 : i32
    %c0_i32_2 = arith.constant 0 : i32
    return %c0_i32, %c0_i32_0, %c0_i32_1 : i32, i32, i32
  }
  func.func @transform_4(%arg0: i32) -> (i32, i32) {
    %c0_i32 = arith.constant 0 : i32
    %c0_i32_0 = arith.constant 0 : i32
    return %arg0, %c0_i32 : i32, i32
  }
}

</mosaic_0001>

<llo_original>
// kernel: tpu_custom_call.1
$region0: #{tpu_custom_call.1}
  #allocation0 [shape = 'u32[]', space=smem, size = 0x4, offset = 0x4, fixed_abs, tag = 'smem constant byte address 0x4 - core index']
  #allocation1 [shape = 'u32[144,128]{1,0:T(1,128)}', space=vmem, size = 0x12000, scoped, tag = 'internal scratch']
  %s0 = inlined_call_operand.hbm [shape: f32[2,16,64], index: 0, kind: input, shape index: {}]
  %s1 = inlined_call_operand.hbm [shape: f32[10,16], index: 1, kind: input, shape index: {}]
  %s2 = inlined_call_operand.vmem [shape: f32[2,1], index: 2, kind: input, shape index: {}]
  %s3 = inlined_call_operand.hbm [shape: f32[2,8,8], index: 3, kind: input, shape index: {}]
  %s4 = inlined_call_operand.hbm [shape: f32[2,8], index: 4, kind: output, shape index: {}]
  %s5 = sld [smem:[#allocation0]]
  $region38: #{tpu_custom_call.1} parent=0
    _
  %s7 = ssub.s32 1, %s5
  %s8 = scalar_select 0, %s7, %s5
  $region1: #{tpu_custom_call.1} parent=0
    #allocation2 [shape = 'u8[16384]{0}', space=vmem, size = 0x4000, scoped, tag = 'input window, operand 0, single buffered']
    #allocation3 [shape = 's32[1]{0}', space=sflag, size = 0x4, scoped, tag = 'scoped memory for tpu_custom_call.1']
    #allocation4 [shape = 's32[1]{0}', space=sflag, size = 0x4, scoped, tag = 'scoped memory for tpu_custom_call.1']
    #allocation5 [shape = 'u8[8192]{0}', space=vmem, size = 0x2000, scoped, tag = 'input window, operand 1, single buffered']
    #allocation6 [shape = 's32[1]{0}', space=sflag, size = 0x4, scoped, tag = 'scoped memory for tpu_custom_call.1']
    #allocation7 [shape = 'u8[8192]{0}', space=vmem, size = 0x2000, scoped, tag = 'input window, operand 3, single buffered']
    #allocation8 [shape = 'u8[1024]{0}', space=vmem, size = 0x400, scoped, tag = 'output window, operand 0, single buffered']
    %9 = vsyncpa [#allocation3], 0
    %10 = vsyncpa [#allocation6], 0
    %11 = vsyncpa [#allocation4], 0
    // Predicated region
    $region2: #{tpu_custom_call.1} parent=1 // pred_check
      _
    $region3: #{tpu_custom_call.1} parent=1 // pred_check_branch
      %13 = sbr.rel (0) target = $region5
    $region4: #{tpu_custom_call.1} parent=1 // pred_region
      %s15 = ssub.s32 512, 512
      %16 = vsyncadd [#allocation3], %s15
      %s17 = sshll.u32 [#allocation2], 4
      %s18 = int_to_ptr.vmem [resolvable:$true] %s17
      %23 = dma.hbm_to_vmem [thread:$0]  %s0, 512, %s18, [#allocation3], 128, 128, 8
    $region5: #{tpu_custom_call.1} parent=1 // pred_fallthru
      _
    // Predicated region
    $region6: #{tpu_custom_call.1} parent=1 // pred_check
      _
    $region7: #{tpu_custom_call.1} parent=1 // pred_check_branch
      %25 = sbr.rel (0) target = $region9
    $region8: #{tpu_custom_call.1} parent=1 // pred_region
      %s27 = ssub.s32 256, 256
      %28 = vsyncadd [#allocation6], %s27
      %s29 = sshll.u32 [#allocation5], 4
      %s30 = int_to_ptr.vmem [resolvable:$true] %s29
      %35 = dma.hbm_to_vmem [thread:$0]  %s1, 256, %s30, [#allocation6], 128, 128, 8
    $region9: #{tpu_custom_call.1} parent=1 // pred_fallthru
      _
    // Predicated region
    $region10: #{tpu_custom_call.1} parent=1 // pred_check
      _
    $region11: #{tpu_custom_call.1} parent=1 // pred_check_branch
      %37 = sbr.rel (0) target = $region13
    $region12: #{tpu_custom_call.1} parent=1 // pred_region
      _
    $region13: #{tpu_custom_call.1} parent=1 // pred_fallthru
      _
    // Predicated region
    $region14: #{tpu_custom_call.1} parent=1 // pred_check
      _
    $region15: #{tpu_custom_call.1} parent=1 // pred_check_branch
      %39 = sbr.rel (0) target = $region17
    $region16: #{tpu_custom_call.1} parent=1 // pred_region
      %s41 = ssub.s32 256, 256
      %42 = vsyncadd [#allocation6], %s41
      %s43 = sshll.u32 [#allocation7], 4
      %s44 = int_to_ptr.vmem [resolvable:$true] %s43
      %49 = dma.hbm_to_vmem [thread:$0]  %s3, 256, %s44, [#allocation6], 128, 128, 8
    $region17: #{tpu_custom_call.1} parent=1 // pred_fallthru
      _
    // Predicated region
    $region18: #{tpu_custom_call.1} parent=1 // pred_check
      _
    $region19: #{tpu_custom_call.1} parent=1 // pred_check_branch
      %51 = sbr.rel (0) target = $region21
    $region20: #{tpu_custom_call.1} parent=1 // pred_region
      %52 = dma.done [#allocation3], 512
    $region21: #{tpu_custom_call.1} parent=1 // pred_fallthru
      _
    // Predicated region
    $region22: #{tpu_custom_call.1} parent=1 // pred_check
      _
    $region23: #{tpu_custom_call.1} parent=1 // pred_check_branch
      %54 = sbr.rel (0) target = $region25
    $region24: #{tpu_custom_call.1} parent=1 // pred_region
      %55 = dma.done [#allocation6], 256
    $region25: #{tpu_custom_call.1} parent=1 // pred_fallthru
      _
    // Predicated region
    $region26: #{tpu_custom_call.1} parent=1 // pred_check
      _
    $region27: #{tpu_custom_call.1} parent=1 // pred_check_branch
      %57 = sbr.rel (0) target = $region29
    $region28: #{tpu_custom_call.1} parent=1 // pred_region
      %58 = dma.done [#allocation6], 256
    $region29: #{tpu_custom_call.1} parent=1 // pred_fallthru
      _
    %v59 = vld [vmem:[#allocation2] sm:$0xff]
    %v60 = vld [vmem:[#allocation2 + $0x8] sm:$0xff]
    %v61 = vld [vmem:[#allocation2 + $0x10] sm:$0xff]
    %v62 = vld [vmem:[#allocation2 + $0x18] sm:$0xff]
    %v63 = vld [vmem:[#allocation5] sm:$0xff]
    %v64 = vld [vmem:[#allocation5 + $0x8] sm:$0x3]
    %vm65 = vcmask 130048
    %v67 = vsel %vm65, %v63, 0
    %v70 = vsel %vm65, %v64, 0
    %72 = vmatprep.subr.mxu0 0.0
    %73 = vmatpush1.msra.mxu0 %v59
    %74 = vmatprep.subr.mxu0 0.0
    %75 = vmatpush1.msra.mxu0 %v60
    %76 = vmatprep.subr.mxu0 0.0
    %77 = vmatpush1.msra.mxu0 0.0
    %78 = vmatprep.subr.mxu0 0.0
    %79 = vmatpush1.msra.mxu0 0.0
    %80 = vmatprep.subr.mxu0 0.0
    %81 = vmatpush1.msra.mxu0 0.0
    %82 = vmatprep.subr.mxu0 0.0
    %83 = vmatpush1.msra.mxu0 0.0
    %84 = vmatprep.subr.mxu0 0.0
    %85 = vmatpush1.msra.mxu0 0.0
    %86 = vmatprep.subr.mxu0 0.0
    %87 = vmatpush1.msra.mxu0 0.0
    %88 = vmatprep.subr.mxu0 0.0
    %89 = vmatpush1.msra.mxu0 0.0
    %90 = vmatprep.subr.mxu0 0.0
    %91 = vmatpush1.msra.mxu0 0.0
    %92 = vmatprep.subr.mxu0 0.0
    %93 = vmatpush1.msra.mxu0 0.0
    %94 = vmatprep.subr.mxu0 0.0
    %95 = vmatpush1.msra.mxu0 0.0
    %96 = vmatprep.subr.mxu0 0.0
    %97 = vmatpush1.msra.mxu0 0.0
    %98 = vmatprep.subr.mxu0 0.0
    %99 = vmatpush1.msra.mxu0 0.0
    %100 = vmatprep.subr.mxu0 0.0
    %101 = vmatpush1.msra.mxu0 0.0
    %102 = vmatprep.subr.mxu0 0.0
    %103 = vmatpush1.msra.mxu0 0.0
    %104 = vmatprep.subr.mxu0 0.0
    %105 = vmatpush1.msra.mxu0 0.0
    %106 = vmatprep.subr.mxu0 0.0
    %107 = vmatpush1.msra.mxu0 0.0
    %108 = vmatprep.subr.mxu0 0.0
    %109 = vmatpush1.msra.mxu0 0.0
    %110 = vmatprep.subr.mxu0 0.0
    %111 = vmatpush1.msra.mxu0 0.0
    %112 = vmatprep.subr.mxu0 0.0
    %113 = vmatpush1.msra.mxu0 0.0
    %114 = vmatprep.subr.mxu0 0.0
    %115 = vmatpush1.msra.mxu0 0.0
    %116 = vmatprep.subr.mxu0 0.0
    %117 = vmatpush1.msra.mxu0 0.0
    %118 = vmatprep.subr.mxu0 0.0
    %119 = vmatpush1.msra.mxu0 0.0
    %120 = vmatprep.subr.mxu0 0.0
    %121 = vmatpush1.msra.mxu0 0.0
    %122 = vmatprep.subr.mxu0 0.0
    %123 = vmatpush1.msra.mxu0 0.0
    %124 = vmatprep.subr.mxu0 0.0
    %125 = vmatpush1.msra.mxu0 0.0
    %126 = vmatprep.subr.mxu0 0.0
    %127 = vmatpush1.msra.mxu0 0.0
    %128 = vmatprep.subr.mxu0 0.0
    %129 = vmatpush1.msra.mxu0 0.0
    %130 = vmatprep.subr.mxu0 0.0
    %131 = vmatpush1.msra.mxu0 0.0
    %132 = vmatprep.subr.mxu0 0.0
    %133 = vmatpush1.msra.mxu0 0.0
    %134 = vmatprep.subr.mxu0 0.0
    %135 = vmatpush1.msra.mxu0 0.0
    %136 = vmatprep.mubr.f32.mxu0 0.0
    %137 = vmatmul.mubr.f32.gmra.mrb[0].mxu0 %v67
    %v138 = vpop.f32.mrb[0].mxu0
    %v139 = vadd.f32 0.0, %v138
    %v140 = vpop.f32.mrb[0].mxu0
    %141 = vmatprep.mubr.f32.mxu0 0.0
    %142 = vmatmul.mubr.f32.gmra.mrb[0].mxu0 %v70
    %v143 = vpop.f32.mrb[0].mxu0
    %v144 = vadd.f32 0.0, %v143
    %v145 = vpop.f32.mrb[0].mxu0
    %146 = vdwg.mxu0
    %147 = vmatprep.subr.mxu0 0.0
    %148 = vmatpush1.msra.mxu0 %v61
    %149 = vmatprep.subr.mxu0 0.0
    %150 = vmatpush1.msra.mxu0 %v62
    %151 = vmatprep.subr.mxu0 0.0
    %152 = vmatpush1.msra.mxu0 0.0
    %153 = vmatprep.subr.mxu0 0.0
    %154 = vmatpush1.msra.mxu0 0.0
    %155 = vmatprep.subr.mxu0 0.0
    %156 = vmatpush1.msra.mxu0 0.0
    %157 = vmatprep.subr.mxu0 0.0
    %158 = vmatpush1.msra.mxu0 0.0
    %159 = vmatprep.subr.mxu0 0.0
    %160 = vmatpush1.msra.mxu0 0.0
    %161 = vmatprep.subr.mxu0 0.0
    %162 = vmatpush1.msra.mxu0 0.0
    %163 = vmatprep.subr.mxu0 0.0
    %164 = vmatpush1.msra.mxu0 0.0
    %165 = vmatprep.subr.mxu0 0.0
    %166 = vmatpush1.msra.mxu0 0.0
    %167 = vmatprep.subr.mxu0 0.0
    %168 = vmatpush1.msra.mxu0 0.0
    %169 = vmatprep.subr.mxu0 0.0
    %170 = vmatpush1.msra.mxu0 0.0
    %171 = vmatprep.subr.mxu0 0.0
    %172 = vmatpush1.msra.mxu0 0.0
    %173 = vmatprep.subr.mxu0 0.0
    %174 = vmatpush1.msra.mxu0 0.0
    %175 = vmatprep.subr.mxu0 0.0
    %176 = vmatpush1.msra.mxu0 0.0
    %177 = vmatprep.subr.mxu0 0.0
    %178 = vmatpush1.msra.mxu0 0.0
    %179 = vmatprep.subr.mxu0 0.0
    %180 = vmatpush1.msra.mxu0 0.0
    %181 = vmatprep.subr.mxu0 0.0
    %182 = vmatpush1.msra.mxu0 0.0
    %183 = vmatprep.subr.mxu0 0.0
    %184 = vmatpush1.msra.mxu0 0.0
    %185 = vmatprep.subr.mxu0 0.0
    %186 = vmatpush1.msra.mxu0 0.0
    %187 = vmatprep.subr.mxu0 0.0
    %188 = vmatpush1.msra.mxu0 0.0
    %189 = vmatprep.subr.mxu0 0.0
    %190 = vmatpush1.msra.mxu0 0.0
    %191 = vmatprep.subr.mxu0 0.0
    %192 = vmatpush1.msra.mxu0 0.0
    %193 = vmatprep.subr.mxu0 0.0
    %194 = vmatpush1.msra.mxu0 0.0
    %195 = vmatprep.subr.mxu0 0.0
    %196 = vmatpush1.msra.mxu0 0.0
    %197 = vmatprep.subr.mxu0 0.0
    %198 = vmatpush1.msra.mxu0 0.0
    %199 = vmatprep.subr.mxu0 0.0
    %200 = vmatpush1.msra.mxu0 0.0
    %201 = vmatprep.subr.mxu0 0.0
    %202 = vmatpush1.msra.mxu0 0.0
    %203 = vmatprep.subr.mxu0 0.0
    %204 = vmatpush1.msra.mxu0 0.0
    %205 = vmatprep.subr.mxu0 0.0
    %206 = vmatpush1.msra.mxu0 0.0
    %207 = vmatprep.subr.mxu0 0.0
    %208 = vmatpush1.msra.mxu0 0.0
    %209 = vmatprep.subr.mxu0 0.0
    %210 = vmatpush1.msra.mxu0 0.0
    %211 = vmatprep.mubr.f32.mxu0 0.0
    %212 = vmatmul.mubr.f32.gmra.mrb[0].mxu0 %v67
    %v213 = vpop.f32.mrb[0].mxu0
    %v214 = vadd.f32 0.0, %v213
    %v215 = vpop.f32.mrb[0].mxu0
    %216 = vmatprep.mubr.f32.mxu0 0.0
    %217 = vmatmul.mubr.f32.gmra.mrb[0].mxu0 %v70
    %v218 = vpop.f32.mrb[0].mxu0
    %v219 = vadd.f32 0.0, %v218
    %v220 = vpop.f32.mrb[0].mxu0
    %221 = vdwg.mxu0
    %v222 = vld [vmem:[%s2] sm:$0x3]
    %224 = vset.pattern.permute.xlu0 0
    %225 = vperm.xlu0 %224, %v222
    %v226 = vpop.permute.xlu0 %225
    %v228 = vadd.f32 %v144, %v226
    %v229 = vadd.f32 %v219, %v226
    %v230 = vxor.u32 %v228, 2147483648
    %v231 = vxor.u32 %v229, 2147483648
    %v232 = vmul.f32 %v230, 1.442695
    %v233 = vpow.pop %v232
    %v234 = vmul.f32 %v231, 1.442695
    %v235 = vpow.pop %v234
    %v236 = vadd.f32 %v233, 1.0
    %v237 = vadd.f32 %v235, 1.0
    %v238 = vrcp.pop %v236
    %v239 = vmul.f32 1.0, %v238
    %v240 = vrcp.pop %v237
    %v241 = vmul.f32 1.0, %v240
    %vm242 = vcmask 1041408
    %v243 = vsel %vm242, %v239, 1.0
    %v244 = vsel %vm242, %v241, 1.0
    %v248 = vunpack.c.l.s4 1966171168
    %v249 = vunpack.c.0.s8 %v248
    %v250 = vlaneseq
    %v251 = vshrl.u32 %v250, 7
    %v252 = vsub.s32 %v249, %v251
    %v253 = vrot.slane %v243, %v252
    %v254 = vcombine.high %v253, %v253
    %v256 = vunpack.c.l.s4 1966171168
    %v257 = vunpack.c.0.s8 %v256
    %v258 = vlaneseq
    %v259 = vshrl.u32 %v258, 7
    %v260 = vsub.s32 %v257, %v259
    %v261 = vrot.slane %v253, %v260
    %v263 = vunpack.c.l.s4 1966171168
    %v264 = vunpack.c.0.s8 %v263
    %v265 = vlaneseq
    %v266 = vshrl.u32 %v265, 7
    %v267 = vsub.s32 %v264, %v266
    %v268 = vrot.slane %v254, %v267
    %v269 = vcombine.high %v261, %v261
    %v271 = vunpack.c.l.s4 1966171168
    %v272 = vunpack.c.0.s8 %v271
    %v273 = vlaneseq
    %v274 = vshrl.u32 %v273, 7
    %v275 = vsub.s32 %v272, %v274
    %v276 = vrot.slane %v244, %v275
    %v277 = vcombine.high %v276, %v276
    %v279 = vunpack.c.l.s4 1966171168
    %v280 = vunpack.c.0.s8 %v279
    %v281 = vlaneseq
    %v282 = vshrl.u32 %v281, 7
    %v283 = vsub.s32 %v280, %v282
    %v284 = vrot.slane %v276, %v283
    %v286 = vunpack.c.l.s4 1966171168
    %v287 = vunpack.c.0.s8 %v286
    %v288 = vlaneseq
    %v289 = vshrl.u32 %v288, 7
    %v290 = vsub.s32 %v287, %v289
    %v291 = vrot.slane %v277, %v290
    %v292 = vcombine.high %v284, %v284
    %v293 = vlaneseq
    %v294 = vshrl.u32 %v293, 7
    %v295 = vsub.s32 0, %v294
    %v296 = vrot.slane %v261, %v295
    %v297 = vlaneseq
    %v298 = vshrl.u32 %v297, 7
    %v299 = vsub.s32 0, %v298
    %v300 = vrot.slane %v268, %v299
    %v301 = vlaneseq
    %v302 = vshrl.u32 %v301, 7
    %v303 = vsub.s32 0, %v302
    %v304 = vrot.slane %v269, %v303
    %v305 = vlaneseq
    %v306 = vshrl.u32 %v305, 7
    %v307 = vsub.s32 0, %v306
    %v308 = vrot.slane %v284, %v307
    %v309 = vlaneseq
    %v310 = vshrl.u32 %v309, 7
    %v311 = vsub.s32 0, %v310
    %v312 = vrot.slane %v291, %v311
    %v313 = vlaneseq
    %v314 = vshrl.u32 %v313, 7
    %v315 = vsub.s32 0, %v314
    %v316 = vrot.slane %v292, %v315
    %v323 = vmul.f32 %v139, %v296
    %v324 = vmul.f32 %v139, %v300
    %v325 = vmul.f32 %v139, %v304
    %v326 = vmul.f32 %v214, %v308
    %v327 = vmul.f32 %v214, %v312
    %v328 = vmul.f32 %v214, %v316
    %vm329 = vcmask 523264
    %v330 = vsel %vm329, %v323, -inf
    %331 = vmax.xlane.f32.xlu0 %v330
    %v332 = vpop.xlane.xlu0 %331
    %v333 = vsel %vm329, %v324, -inf
    %334 = vmax.xlane.f32.xlu0 %v333
    %v335 = vpop.xlane.xlu0 %334
    %v336 = vsel %vm329, %v325, -inf
    %337 = vmax.xlane.f32.xlu0 %v336
    %v338 = vpop.xlane.xlu0 %337
    %v339 = vsel %vm329, %v326, -inf
    %340 = vmax.xlane.f32.xlu0 %v339
    %v341 = vpop.xlane.xlu0 %340
    %v342 = vsel %vm329, %v327, -inf
    %343 = vmax.xlane.f32.xlu0 %v342
    %v344 = vpop.xlane.xlu0 %343
    %v345 = vsel %vm329, %v328, -inf
    %346 = vmax.xlane.f32.xlu0 %v345
    %v347 = vpop.xlane.xlu0 %346
    %v348 = vsub.f32 %v323, %v332
    %v349 = vsub.f32 %v324, %v335
    %v350 = vsub.f32 %v325, %v338
    %v351 = vsub.f32 %v326, %v341
    %v352 = vsub.f32 %v327, %v344
    %v353 = vsub.f32 %v328, %v347
    %v354 = vmul.f32 %v348, 1.442695
    %v355 = vpow.pop %v354
    %v356 = vmul.f32 %v349, 1.442695
    %v357 = vpow.pop %v356
    %v358 = vmul.f32 %v350, 1.442695
    %v359 = vpow.pop %v358
    %v360 = vmul.f32 %v351, 1.442695
    %v361 = vpow.pop %v360
    %v362 = vmul.f32 %v352, 1.442695
    %v363 = vpow.pop %v362
    %v364 = vmul.f32 %v353, 1.442695
    %v365 = vpow.pop %v364
    %v366 = vsel %vm329, %v355, 0.0
    %367 = vadd.xlane.f32.xlu0 %v366
    %v368 = vpop.xlane.xlu0 %367
    %v369 = vsel %vm329, %v357, 0.0
    %370 = vadd.xlane.f32.xlu0 %v369
    %v371 = vpop.xlane.xlu0 %370
    %v372 = vsel %vm329, %v359, 0.0
    %373 = vadd.xlane.f32.xlu0 %v372
    %v374 = vpop.xlane.xlu0 %373
    %v375 = vsel %vm329, %v361, 0.0
    %376 = vadd.xlane.f32.xlu0 %v375
    %v377 = vpop.xlane.xlu0 %376
    %v378 = vsel %vm329, %v363, 0.0
    %379 = vadd.xlane.f32.xlu0 %v378
    %v380 = vpop.xlane.xlu0 %379
    %v381 = vsel %vm329, %v365, 0.0
    %382 = vadd.xlane.f32.xlu0 %v381
    %v383 = vpop.xlane.xlu0 %382
    %v384 = vrcp.pop %v368
    %v385 = vmul.f32 1.0, %v384
    %v386 = vrcp.pop %v371
    %v387 = vmul.f32 1.0, %v386
    %v388 = vrcp.pop %v374
    %v389 = vmul.f32 1.0, %v388
    %v390 = vrcp.pop %v377
    %v391 = vmul.f32 1.0, %v390
    %v392 = vrcp.pop %v380
    %v393 = vmul.f32 1.0, %v392
    %v394 = vrcp.pop %v383
    %v395 = vmul.f32 1.0, %v394
    %v396 = vld [vmem:[#allocation7] sm:$0xff]
    %s397 = scalar_lea.vmem [#allocation7], 8
    %v398 = vld [vmem:[%s397] sm:$0xff]
    %v401 = vlaneseq
    %v402 = vand.u32 %v401, 127
    %v403 = vlaneseq
    %v404 = vshrl.u32 %v403, 7
    %v405 = vsub.s32 %v402, %v404
    %v406 = vrot.slane %v387, %v405
    %v407 = vlaneseq
    %v408 = vshrl.u32 %v407, 7
    %v409 = vsub.s32 %v402, %v408
    %v410 = vrot.slane %v393, %v409
    %vm411 = vcmask 1041409
    %v412 = vsel %vm411, %v410, %v406
    %vm413 = vcmask 64512
    %v414 = vsel %vm413, %v412, 0
    %416 = vmatprep.subr.mxu0 0.0
    %417 = vmatpush1.msra.mxu0 %v398
    %418 = vmatprep.subr.mxu0 0.0
    %419 = vmatpush1.msra.mxu0 0.0
    %420 = vmatprep.subr.mxu0 0.0
    %421 = vmatpush1.msra.mxu0 0.0
    %422 = vmatprep.subr.mxu0 0.0
    %423 = vmatpush1.msra.mxu0 0.0
    %424 = vmatprep.subr.mxu0 0.0
    %425 = vmatpush1.msra.mxu0 0.0
    %426 = vmatprep.subr.mxu0 0.0
    %427 = vmatpush1.msra.mxu0 0.0
    %428 = vmatprep.subr.mxu0 0.0
    %429 = vmatpush1.msra.mxu0 0.0
    %430 = vmatprep.subr.mxu0 0.0
    %431 = vmatpush1.msra.mxu0 0.0
    %432 = vmatprep.subr.mxu0 0.0
    %433 = vmatpush1.msra.mxu0 0.0
    %434 = vmatprep.subr.mxu0 0.0
    %435 = vmatpush1.msra.mxu0 0.0
    %436 = vmatprep.subr.mxu0 0.0
    %437 = vmatpush1.msra.mxu0 0.0
    %438 = vmatprep.subr.mxu0 0.0
    %439 = vmatpush1.msra.mxu0 0.0
    %440 = vmatprep.subr.mxu0 0.0
    %441 = vmatpush1.msra.mxu0 0.0
    %442 = vmatprep.subr.mxu0 0.0
    %443 = vmatpush1.msra.mxu0 0.0
    %444 = vmatprep.subr.mxu0 0.0
    %445 = vmatpush1.msra.mxu0 0.0
    %446 = vmatprep.subr.mxu0 0.0
    %447 = vmatpush1.msra.mxu0 0.0
    %448 = vmatprep.subr.mxu0 0.0
    %449 = vmatpush1.msra.mxu0 0.0
    %450 = vmatprep.subr.mxu0 0.0
    %451 = vmatpush1.msra.mxu0 0.0
    %452 = vmatprep.subr.mxu0 0.0
    %453 = vmatpush1.msra.mxu0 0.0
    %454 = vmatprep.subr.mxu0 0.0
    %455 = vmatpush1.msra.mxu0 0.0
    %456 = vmatprep.subr.mxu0 0.0
    %457 = vmatpush1.msra.mxu0 0.0
    %458 = vmatprep.subr.mxu0 0.0
    %459 = vmatpush1.msra.mxu0 0.0
    %460 = vmatprep.subr.mxu0 0.0
    %461 = vmatpush1.msra.mxu0 0.0
    %462 = vmatprep.subr.mxu0 0.0
    %463 = vmatpush1.msra.mxu0 0.0
    %464 = vmatprep.subr.mxu0 0.0
    %465 = vmatpush1.msra.mxu0 0.0
    %466 = vmatprep.subr.mxu0 0.0
    %467 = vmatpush1.msra.mxu0 0.0
    %468 = vmatprep.subr.mxu0 0.0
    %469 = vmatpush1.msra.mxu0 0.0
    %470 = vmatprep.subr.mxu0 0.0
    %471 = vmatpush1.msra.mxu0 0.0
    %472 = vmatprep.subr.mxu0 0.0
    %473 = vmatpush1.msra.mxu0 0.0
    %474 = vmatprep.subr.mxu0 0.0
    %475 = vmatpush1.msra.mxu0 0.0
    %476 = vmatprep.subr.mxu0 0.0
    %477 = vmatpush1.msra.mxu0 0.0
    %478 = vmatprep.subr.mxu0 0.0
    %479 = vmatpush1.msra.mxu0 0.0
    %480 = vmatprep.mubr.f32.mxu0 0.0
    %481 = vmatmul.mubr.f32.gmra.mrb[0].mxu0 %v414
    %v482 = vpop.f32.mrb[0].mxu0
    %v483 = vadd.f32 0.0, %v482
    %v484 = vpop.f32.mrb[0].mxu0
    %485 = vdwg.mxu0
    %v488 = vlaneseq
    %v489 = vshrl.u32 %v488, 7
    %v490 = vsub.s32 %v402, %v489
    %v491 = vrot.slane %v385, %v490
    %v492 = vlaneseq
    %v493 = vshrl.u32 %v492, 7
    %v494 = vsub.s32 %v402, %v493
    %v495 = vrot.slane %v391, %v494
    %v496 = vsel %vm411, %v495, %v491
    %v497 = vsel %vm413, %v496, 0
    %499 = vmatprep.subr.mxu0 0.0
    %500 = vmatpush1.msra.mxu0 %v396
    %501 = vmatprep.subr.mxu0 0.0
    %502 = vmatpush1.msra.mxu0 0.0
    %503 = vmatprep.subr.mxu0 0.0
    %504 = vmatpush1.msra.mxu0 0.0
    %505 = vmatprep.subr.mxu0 0.0
    %506 = vmatpush1.msra.mxu0 0.0
    %507 = vmatprep.subr.mxu0 0.0
    %508 = vmatpush1.msra.mxu0 0.0
    %509 = vmatprep.subr.mxu0 0.0
    %510 = vmatpush1.msra.mxu0 0.0
    %511 = vmatprep.subr.mxu0 0.0
    %512 = vmatpush1.msra.mxu0 0.0
    %513 = vmatprep.subr.mxu0 0.0
    %514 = vmatpush1.msra.mxu0 0.0
    %515 = vmatprep.subr.mxu0 0.0
    %516 = vmatpush1.msra.mxu0 0.0
    %517 = vmatprep.subr.mxu0 0.0
    %518 = vmatpush1.msra.mxu0 0.0
    %519 = vmatprep.subr.mxu0 0.0
    %520 = vmatpush1.msra.mxu0 0.0
    %521 = vmatprep.subr.mxu0 0.0
    %522 = vmatpush1.msra.mxu0 0.0
    %523 = vmatprep.subr.mxu0 0.0
    %524 = vmatpush1.msra.mxu0 0.0
    %525 = vmatprep.subr.mxu0 0.0
    %526 = vmatpush1.msra.mxu0 0.0
    %527 = vmatprep.subr.mxu0 0.0
    %528 = vmatpush1.msra.mxu0 0.0
    %529 = vmatprep.subr.mxu0 0.0
    %530 = vmatpush1.msra.mxu0 0.0
    %531 = vmatprep.subr.mxu0 0.0
    %532 = vmatpush1.msra.mxu0 0.0
    %533 = vmatprep.subr.mxu0 0.0
    %534 = vmatpush1.msra.mxu0 0.0
    %535 = vmatprep.subr.mxu0 0.0
    %536 = vmatpush1.msra.mxu0 0.0
    %537 = vmatprep.subr.mxu0 0.0
    %538 = vmatpush1.msra.mxu0 0.0
    %539 = vmatprep.subr.mxu0 0.0
    %540 = vmatpush1.msra.mxu0 0.0
    %541 = vmatprep.subr.mxu0 0.0
    %542 = vmatpush1.msra.mxu0 0.0
    %543 = vmatprep.subr.mxu0 0.0
    %544 = vmatpush1.msra.mxu0 0.0
    %545 = vmatprep.subr.mxu0 0.0
    %546 = vmatpush1.msra.mxu0 0.0
    %547 = vmatprep.subr.mxu0 0.0
    %548 = vmatpush1.msra.mxu0 0.0
    %549 = vmatprep.subr.mxu0 0.0
    %550 = vmatpush1.msra.mxu0 0.0
    %551 = vmatprep.subr.mxu0 0.0
    %552 = vmatpush1.msra.mxu0 0.0
    %553 = vmatprep.subr.mxu0 0.0
    %554 = vmatpush1.msra.mxu0 0.0
    %555 = vmatprep.subr.mxu0 0.0
    %556 = vmatpush1.msra.mxu0 0.0
    %557 = vmatprep.subr.mxu0 0.0
    %558 = vmatpush1.msra.mxu0 0.0
    %559 = vmatprep.subr.mxu0 0.0
    %560 = vmatpush1.msra.mxu0 0.0
    %561 = vmatprep.subr.mxu0 0.0
    %562 = vmatpush1.msra.mxu0 0.0
    %563 = vmatprep.mubr.f32.mxu0 0.0
    %564 = vmatmul.mubr.f32.gmra.mrb[0].mxu0 %v497
    %v565 = vpop.f32.mrb[0].mxu0
    %v566 = vadd.f32 %v483, %v565
    %v567 = vpop.f32.mrb[0].mxu0
    %568 = vdwg.mxu0
    %v569 = vmul.f32 %v389, 0.7
    %v570 = vmul.f32 %v395, 0.7
    %v571 = vmul.f32 %v566, 0.3
    %v573 = vlaneseq
    %v574 = vshrl.u32 %v573, 7
    %v575 = vsub.s32 0, %v574
    %v576 = vrot.slane %v571, %v575
    %578 = vbcast.lane.b32.xlu0 %v576, 256
    %v579 = vpop.permute.xlu0 %578
    %v580 = vlaneseq
    %v581 = vshrl.u32 %v580, 7
    %v582 = vsub.s32 1, %v581
    %v583 = vrot.slane %v571, %v582
    %585 = vbcast.lane.b32.xlu0 %v583, 256
    %v586 = vpop.permute.xlu0 %585
    %v589 = vadd.f32 %v569, %v579
    %v590 = vadd.f32 %v570, %v586
    %593 = vset.pattern.permute.xlu0 0
    %594 = vperm.xlu0 %593, %v589
    %v595 = vpop.permute.xlu0 %594
    %596 = vset.pattern.permute.xlu0 0
    %597 = vperm.xlu0 %596, %v590
    %v598 = vpop.permute.xlu0 %597
    %v599 = vlaneseq
    %v600 = vshrl.u32 %v599, 7
    %v601 = vsub.s32 %v402, %v600
    %v602 = vrot.slane %v595, %v601
    %v603 = vlaneseq
    %v604 = vshrl.u32 %v603, 7
    %v605 = vsub.s32 %v402, %v604
    %v606 = vrot.slane %v598, %v605
    %v607 = vsel %vm411, %v606, %v602
    %vm609 = vcmask 58368
    %610 = vst.msk [vmem:[#allocation8] sm:$0x3] %vm609, %v607
    // Predicated region
    $region30: #{tpu_custom_call.1} parent=1 // pred_check
      _
    $region31: #{tpu_custom_call.1} parent=1 // pred_check_branch
      %612 = sbr.rel (0) target = $region33
    $region32: #{tpu_custom_call.1} parent=1 // pred_region
      %s614 = ssub.s32 32, 32
      %615 = vsyncadd [#allocation4], %s614
      %s617 = sshll.u32 [#allocation8], 4
      %s618 = int_to_ptr.vmem [resolvable:$true] %s617
      %620 = dma.vmem_to_hbm [thread:$0]  %s618, 32, %s4, [#allocation4]
    $region33: #{tpu_custom_call.1} parent=1 // pred_fallthru
      _
    // Predicated region
    $region34: #{tpu_custom_call.1} parent=1 // pred_check
      _
    $region35: #{tpu_custom_call.1} parent=1 // pred_check_branch
      %622 = sbr.rel (0) target = $region37
    $region36: #{tpu_custom_call.1} parent=1 // pred_region
      %623 = dma.done [#allocation4], 32
    $region37: #{tpu_custom_call.1} parent=1 // pred_fallthru
      _
    %624 = vsyncpa [#allocation3], 1
    %625 = vsyncpa [#allocation6], 1
    %626 = vsyncpa [#allocation4], 1

</llo_original>
